<compile_context>
chip_gen: v6e
topology: v6e:2x2x1
jax: 0.10.0
libtpu: 0.0.40
codegen_flags: <defaults>
</compile_context>

<pallas_src>
import functools

import jax
import jax.numpy as jnp
from jax import lax
from jax.experimental import pallas as pl
from jax.experimental.pallas import tpu as pltpu

_EPS = 1e-5


def _basic_block_kernel(lhs1_ref, w1c_ref, w2c_ref, sb_ref, *rest,
                        Ho, WoC, has_shortcut):
    """One grid step = NB images stacked on the matmul M axis.

    lhs1_ref: (NB*Ho, 3*(W+2)*Cin) bf16  im2col'd input (3 H taps fused on K).
    w1c_ref : (3*(W+2)*Cin, WoC or 2*WoC) bf16 fused conv1 [+ 1x1 shortcut].
    w2c_ref : (3*WoC, WoC) bf16          fused conv2 (3 H taps on K).
    sb_ref  : (8, WoC) f32               rows = s1,b1,s2,b2,ss,bs,0,0.
    xres_ref: (NB*Ho, WoC) f32           exact identity residual (only when the
                                         shortcut is the identity).
    o_ref   : (NB*Ho, WoC) f32           lane-dense output.
    """
    if has_shortcut:
        (o_ref,) = rest
        xres_ref = None
    else:
        xres_ref, o_ref = rest

    s1 = sb_ref[0:1, :]
    b1 = sb_ref[1:2, :]
    s2 = sb_ref[2:3, :]
    b2 = sb_ref[3:4, :]

    # ---- conv1 (3x3, stride, pad=1) [+ 1x1 projection shortcut]: 1 matmul ----
    res1 = jnp.dot(lhs1_ref[...], w1c_ref[...],
                   preferred_element_type=jnp.float32)          # (M, WoC or 2*WoC)
    out1 = jnp.maximum(res1[:, :WoC] * s1 + b1, 0.0)            # bn1 + relu, f32

    if has_shortcut:
        ss = sb_ref[4:5, :]
        bs = sb_ref[5:6, :]
        resid = res1[:, WoC:] * ss + bs                         # projection + bn
    else:
        resid = xres_ref[...]                                   # exact identity

    # ---- conv2 (3x3, stride=1, pad=1): fuse the 3 H taps into one K matmul ----
    M1 = out1.shape[0]
    NB = M1 // Ho
    o3 = out1.reshape(NB, Ho, WoC)                              # split back per image
    zrow = jnp.zeros((NB, 1, WoC), jnp.float32)
    o3p = jnp.concatenate([zrow, o3, zrow], axis=1)             # per-image H zero-pad
    lhs2 = jnp.concatenate([o3p[:, k:k + Ho, :] for k in range(3)], axis=2)
    lhs2 = lhs2.reshape(M1, 3 * WoC).astype(jnp.bfloat16)       # (M, 3*WoC) bf16
    out2 = jnp.dot(lhs2, w2c_ref[...], preferred_element_type=jnp.float32)
    out2 = out2 * s2 + b2                                       # bn2

    o_ref[...] = jnp.maximum(out2 + resid, 0.0).astype(o_ref.dtype)


def _fold_bn(gamma, beta, mean, var, eps=_EPS):
    scale = (gamma / jnp.sqrt(var + eps)).astype(jnp.float32)
    bias = (beta - mean * scale).astype(jnp.float32)
    return scale, bias


def _lane_tile(vec_c, wo):
    """(C,) per-channel vector -> (1, Wo*C) lane-tiled row (lane = wo*C + c)."""
    return jnp.tile(vec_c.astype(jnp.float32), wo).reshape(1, -1)


def _conv_row_matrices(w_hwio, *, w_in, wo, stride, pad):
    """Fold the W-axis taps of a conv into per-row-tap Toeplitz weight matrices.

    Returns M of shape (KH, w_in*Cin, wo*Cout) so that, for an input row whose
    lanes are (w, ci) flattened, row-tap kh contributes  row @ M[kh]  to the
    lane-flattened (wo, co) output row.  The input column read for output wo
    and W-tap kw is  stride*wo + kw - pad ; out-of-range columns contribute
    zero (virtual W padding).  `pad` may be negative to express a fixed offset
    into an already-padded row (used for the 1x1 shortcut).
    """
    kh_, kw_, cin, cout = w_hwio.shape
    m = jnp.zeros((kh_, w_in, cin, wo, cout), jnp.float32)
    wo_idx = jnp.arange(wo)
    for dw in range(kw_):
        cols = stride * wo_idx + dw - pad                       # (wo,)
        valid = (cols >= 0) & (cols < w_in)
        cols = jnp.clip(cols, 0, w_in - 1)
        upd = jnp.where(valid[:, None, None, None],
                        jnp.broadcast_to(
                            w_hwio[:, dw][None].astype(jnp.float32),
                            (wo, kh_, cin, cout)),
                        0.0)
        m = m.at[:, cols, :, wo_idx, :].add(upd)
    return m.reshape(kh_, w_in * cin, wo * cout)


def _pick_batch_block(n, ho, act_bytes_per_image, weight_bytes,
                      vmem_budget=36 << 20):
    """Images per grid step: largest batch block whose row count stays a
    multiple of the bf16 sublane tile (16) unless the block covers the whole
    batch, that fits double-buffered step data + weights in a conservative
    VMEM budget, stopping once the matmul M dim reaches 256 rows (MXU full)."""
    best = None
    for nb in range(1, n + 1):
        if n % nb:
            continue
        if nb != n and (nb * ho) % 16 != 0:
            continue
        if 2 * weight_bytes + 2 * nb * act_bytes_per_image > vmem_budget:
            continue
        best = nb
        if nb * ho >= 256:
            break
    if best is None:
        for nb in range(1, n + 1):
            if n % nb == 0 and (nb == n or (nb * ho) % 16 == 0):
                return nb
    return best


def basic_block_forward(x_nchw, params, *, stride):
    """PyTorch-semantics BasicBlock.forward (inference BN). NCHW f32 in/out."""
    N, Cin, H, W = x_nchw.shape
    Cout = params["conv1_w"].shape[0]
    has_shortcut = (stride != 1) or (Cin != Cout)
    Ho = (H - 1) // stride + 1            # == floor((H + 2 - 3)/stride) + 1
    Wo = (W - 1) // stride + 1
    Wp = W + 2
    WpC = Wp * Cin
    WoC = Wo * Cout
    K1 = 3 * WpC
    K2 = 3 * WoC

    # --- activations: NCHW -> NHWC -> halo-padded -> lane-flatten (W,C) ->
    #     im2col over the 3 H taps (stride folded in) -> stack images on M. ---
    x_nhwc = jnp.transpose(x_nchw, (0, 2, 3, 1)).astype(jnp.float32)
    xp = jnp.pad(x_nhwc, ((0, 0), (1, 1), (1, 1), (0, 0)))
    rows = xp.reshape(N, H + 2, WpC)
    taps = [rows[:, kh:kh + stride * (Ho - 1) + 1:stride, :] for kh in range(3)]
    lhs1 = jnp.concatenate(taps, axis=-1).reshape(N * Ho, K1).astype(jnp.bfloat16)

    # --- weights: Toeplitz fold of the W taps, then fuse the 3 H taps along K;
    #     append the 1x1 projection shortcut as extra output lanes (or pass the
    #     exact identity residual instead). ---
    w1 = jnp.transpose(params["conv1_w"], (2, 3, 1, 0))          # OIHW -> HWIO
    w2 = jnp.transpose(params["conv2_w"], (2, 3, 1, 0))
    w1m = _conv_row_matrices(w1, w_in=Wp, wo=Wo, stride=stride, pad=0).reshape(K1, WoC)
    w2m = _conv_row_matrices(w2, w_in=Wo, wo=Wo, stride=1, pad=1).reshape(K2, WoC)
    s1, b1 = _fold_bn(params["bn1_gamma"], params["bn1_beta"],
                      params["bn1_mean"], params["bn1_var"])
    s2, b2 = _fold_bn(params["bn2_gamma"], params["bn2_beta"],
                      params["bn2_mean"], params["bn2_var"])
    sb_rows = [_lane_tile(s1, Wo), _lane_tile(b1, Wo),
               _lane_tile(s2, Wo), _lane_tile(b2, Wo)]

    inputs_extra, specs_extra = [], []
    if has_shortcut:
        ws = jnp.transpose(params["sc_w"], (2, 3, 1, 0))         # (1,1,Cin,Cout)
        # 1x1 shortcut reads padded column stride*wo + 1 of the middle H tap.
        wsm = _conv_row_matrices(ws, w_in=Wp, wo=Wo, stride=stride, pad=-1)[0]
        ws_full = jnp.zeros((K1, WoC), jnp.float32).at[WpC:2 * WpC, :].set(wsm)
        w1c = jnp.concatenate([w1m, ws_full], axis=1)            # (K1, 2*WoC)
        ss, bs = _fold_bn(params["bns_gamma"], params["bns_beta"],
                          params["bns_mean"], params["bns_var"])
        sb_rows += [_lane_tile(ss, Wo), _lane_tile(bs, Wo)]
    else:
        w1c = w1m
        sb_rows += [jnp.zeros((1, WoC), jnp.float32)] * 2
        xres = x_nhwc.reshape(N * Ho, WoC)                       # exact identity, f32
        inputs_extra = [xres]
    sb_rows += [jnp.zeros((1, WoC), jnp.float32)] * 2
    sb = jnp.concatenate(sb_rows, axis=0)                        # (8, WoC), one DMA
    w1c = w1c.astype(jnp.bfloat16)
    w2c = w2m.astype(jnp.bfloat16)
    n1 = w1c.shape[1]

    # --- batch blocking (VMEM-budgeted, MXU-M targeted) ---
    act_bytes = 2 * Ho * K1 + 4 * Ho * WoC + (0 if has_shortcut else 4 * Ho * WoC)
    weight_bytes = 2 * (K1 * n1 + K2 * WoC) + 4 * 8 * WoC
    NB = _pick_batch_block(N, Ho, act_bytes, weight_bytes)
    MB = NB * Ho
    grid = (N // NB,)

    kernel = functools.partial(_basic_block_kernel, Ho=Ho, WoC=WoC,
                               has_shortcut=has_shortcut)

    in_specs = [
        pl.BlockSpec((MB, K1), lambda n: (n, 0)),       # lhs1 (bf16)
        pl.BlockSpec((K1, n1), lambda n: (0, 0)),       # fused conv1 [+ shortcut]
        pl.BlockSpec((K2, WoC), lambda n: (0, 0)),      # fused conv2
        pl.BlockSpec((8, WoC), lambda n: (0, 0)),       # all BN scale/bias rows
    ]
    inputs = [lhs1, w1c, w2c, sb]
    if not has_shortcut:
        in_specs.append(pl.BlockSpec((MB, WoC), lambda n: (n, 0)))
        inputs += inputs_extra

    out_flat = pl.pallas_call(
        kernel,
        out_shape=jax.ShapeDtypeStruct((N * Ho, WoC), jnp.float32),
        grid_spec=pltpu.PrefetchScalarGridSpec(
            num_scalar_prefetch=0,
            grid=grid,
            in_specs=in_specs,
            out_specs=pl.BlockSpec((MB, WoC), lambda n: (n, 0)),
        ),
        compiler_params=pltpu.CompilerParams(
            dimension_semantics=("parallel",),
            vmem_limit_bytes=48 * 1024 * 1024),
    )(*inputs)

    out = out_flat.reshape(N, Ho, Wo, Cout)
    return jnp.transpose(out, (0, 3, 1, 2))                      # back to NCHW


def init_params(key, in_planes, planes, stride):
    """Deterministic synthetic parameters matching the nn.Module shapes."""
    k1, k2, k3 = jax.random.split(key, 3)
    ar = jnp.arange(planes, dtype=jnp.float32)
    params = {
        "conv1_w": 0.1 * jax.random.normal(k1, (planes, in_planes, 3, 3), jnp.float32),
        "conv2_w": 0.1 * jax.random.normal(k2, (planes, planes, 3, 3), jnp.float32),
        "bn1_gamma": 1.0 + 0.10 * ar, "bn1_beta": 0.05 * ar - 0.10,
        "bn1_mean": 0.02 * ar,        "bn1_var": 1.0 + 0.03 * ar,
        "bn2_gamma": 1.0 - 0.05 * ar, "bn2_beta": 0.02 * ar + 0.05,
        "bn2_mean": -0.01 * ar,       "bn2_var": 1.0 + 0.02 * ar,
    }
    if stride != 1 or in_planes != planes:
        params.update({
            "sc_w": 0.1 * jax.random.normal(k3, (planes, in_planes, 1, 1), jnp.float32),
            "bns_gamma": 1.0 + 0.07 * ar, "bns_beta": -0.03 * ar,
            "bns_mean": 0.015 * ar,       "bns_var": 1.0 + 0.04 * ar,
        })
    return params


def basic_block_reference(x_nchw, params, *, stride, operand_dtype=jnp.float32):
    """Pure-JAX reference (lax convs, NCHW).  With operand_dtype=bfloat16 it
    quantizes the conv operands at exactly the same points as the kernel, so
    the comparison stays tight even with bf16 MXU operands."""
    dn = ("NCHW", "OIHW", "NCHW")

    def conv(x, w, s, pad):
        return lax.conv_general_dilated(
            x.astype(operand_dtype), w.astype(operand_dtype), (s, s), pad,
            dimension_numbers=dn, precision=lax.Precision.HIGHEST,
            preferred_element_type=jnp.float32)

    def bn(y, g, b, m, v):
        g, b = g.reshape(1, -1, 1, 1), b.reshape(1, -1, 1, 1)
        m, v = m.reshape(1, -1, 1, 1), v.reshape(1, -1, 1, 1)
        return (y - m) / jnp.sqrt(v + _EPS) * g + b

    y = conv(x_nchw, params["conv1_w"], stride, ((1, 1), (1, 1)))
    y = jnp.maximum(bn(y, params["bn1_gamma"], params["bn1_beta"],
                       params["bn1_mean"], params["bn1_var"]), 0.0)
    y = conv(y, params["conv2_w"], 1, ((1, 1), (1, 1)))
    y = bn(y, params["bn2_gamma"], params["bn2_beta"],
           params["bn2_mean"], params["bn2_var"])
    Cin, Cout = x_nchw.shape[1], params["conv1_w"].shape[0]
    if stride != 1 or Cin != Cout:
        s = conv(x_nchw, params["sc_w"], stride, ((0, 0), (0, 0)))
        s = bn(s, params["bns_gamma"], params["bns_beta"],
               params["bns_mean"], params["bns_var"])
    else:
        s = x_nchw.astype(jnp.float32)
    return jnp.maximum(y + s, 0.0)


if __name__ == "__main__":
    key = jax.random.PRNGKey(0)

    configs = [
        # (N, in_planes, planes, H, W, stride)
        (2, 4, 8, 16, 16, 1),    # projection shortcut (Cin != Cout), Wo*Cout = 128
        (2, 8, 8, 16, 16, 1),    # identity shortcut (exact f32 residual add)
        (2, 4, 8, 16, 16, 2),    # strided projection shortcut
        (32, 4, 8, 16, 16, 1),   # larger batch -> multi-step grid, M = 256 rows
    ]

    for idx, (N, cin, planes, H, W, stride) in enumerate(configs):
        kx, kp, key = jax.random.split(key, 3)
        x = jax.random.normal(kx, (N, cin, H, W), jnp.float32)
        params = init_params(kp, cin, planes, stride)

        out = jax.block_until_ready(basic_block_forward(x, params, stride=stride))
        Ho = (H - 1) // stride + 1
        Wo = (W - 1) // stride + 1
        assert out.shape == (N, planes, Ho, Wo), (idx, out.shape)

        # bf16-tracking reference: same operand quantization points as the kernel.
        ref_bf = basic_block_reference(x, params, stride=stride,
                                       operand_dtype=jnp.bfloat16)
        # Full f32 reference: loose sanity check on the bf16 precision cost.
        ref_f32 = basic_block_reference(x, params, stride=stride)

        err_bf = float(jnp.max(jnp.abs(out - ref_bf)))
        err_f32 = float(jnp.max(jnp.abs(out - ref_f32)))
        assert jnp.allclose(out, ref_bf, atol=1e-2, rtol=1e-2), (
            f"config {idx}: max abs err vs bf16-ref = {err_bf}")
        assert jnp.allclose(out, ref_f32, atol=2e-1, rtol=1e-1), (
            f"config {idx}: max abs err vs f32-ref = {err_f32}")

    print("KERNEL_OK")
</pallas_src>

<mosaic_0001>
module attributes {stable_mosaic.version = 11 : i64} {
  func.func @_basic_block_kernel(%arg0: i32, %arg1: memref<32x216xbf16, #tpu.memory_space<vmem>>, %arg2: memref<216x256xbf16, #tpu.memory_space<vmem>>, %arg3: memref<384x128xbf16, #tpu.memory_space<vmem>>, %arg4: memref<8x128xf32, #tpu.memory_space<vmem>>, %arg5: memref<32x128xf32, #tpu.memory_space<vmem>>) attributes {dimension_semantics = [#tpu.dimension_semantics<parallel>], iteration_bounds = array<i64: 1>, scalar_prefetch = 0 : i64, scratch_operands = 0 : i64, tpu.core_type = #tpu.core_type<tc>, window_params = [{transform_indices = @transform_0, window_bounds = array<i64: 32, 216>}, {pipeline_mode = #tpu.pipeline_mode<synchronous>, transform_indices = @transform_1, window_bounds = array<i64: 216, 256>}, {pipeline_mode = #tpu.pipeline_mode<synchronous>, transform_indices = @transform_2, window_bounds = array<i64: 384, 128>}, {pipeline_mode = #tpu.pipeline_mode<synchronous>, transform_indices = @transform_3, window_bounds = array<i64: 8, 128>}, {transform_indices = @transform_4, window_bounds = array<i64: 32, 128>}]} {
    %c0 = arith.constant 0 : index
    %c0_0 = arith.constant 0 : index
    %0 = vector.load %arg4[%c0, %c0_0] : memref<8x128xf32, #tpu.memory_space<vmem>>, vector<1x128xf32>
    %c1 = arith.constant 1 : index
    %c0_1 = arith.constant 0 : index
    %1 = vector.load %arg4[%c1, %c0_1] : memref<8x128xf32, #tpu.memory_space<vmem>>, vector<1x128xf32>
    %c2 = arith.constant 2 : index
    %c0_2 = arith.constant 0 : index
    %2 = vector.load %arg4[%c2, %c0_2] : memref<8x128xf32, #tpu.memory_space<vmem>>, vector<1x128xf32>
    %c3 = arith.constant 3 : index
    %c0_3 = arith.constant 0 : index
    %3 = vector.load %arg4[%c3, %c0_3] : memref<8x128xf32, #tpu.memory_space<vmem>>, vector<1x128xf32>
    %c0_4 = arith.constant 0 : index
    %c0_5 = arith.constant 0 : index
    %4 = vector.load %arg1[%c0_4, %c0_5] : memref<32x216xbf16, #tpu.memory_space<vmem>>, vector<32x216xbf16>
    %c0_6 = arith.constant 0 : index
    %c0_7 = arith.constant 0 : index
    %5 = vector.load %arg2[%c0_6, %c0_7] : memref<216x256xbf16, #tpu.memory_space<vmem>>, vector<216x256xbf16>
    %cst = arith.constant dense<0.000000e+00> : vector<32x256xf32>
    %6 = tpu.matmul %4, %5, %cst {dimension_numbers = #tpu.dot_dimension_numbers<[1], [0], [0], [1], [0, 0, 1, 1], [], []>} : vector<32x216xbf16>, vector<216x256xbf16>, vector<32x256xf32> -> vector<32x256xf32>
    %7 = vector.extract_strided_slice %6 {offsets = [0, 0], sizes = [32, 128], strides = [1, 1]} : vector<32x256xf32> to vector<32x128xf32>
    %8 = vector.broadcast %0 : vector<1x128xf32> to vector<32x128xf32>
    %9 = arith.mulf %7, %8 : vector<32x128xf32>
    %10 = vector.broadcast %1 : vector<1x128xf32> to vector<32x128xf32>
    %11 = arith.addf %9, %10 : vector<32x128xf32>
    %cst_8 = arith.constant 0.000000e+00 : f32
    %12 = vector.broadcast %cst_8 : f32 to vector<32x128xf32>
    %13 = arith.maximumf %11, %12 : vector<32x128xf32>
    %c4 = arith.constant 4 : index
    %c0_9 = arith.constant 0 : index
    %14 = vector.load %arg4[%c4, %c0_9] : memref<8x128xf32, #tpu.memory_space<vmem>>, vector<1x128xf32>
    %c5 = arith.constant 5 : index
    %c0_10 = arith.constant 0 : index
    %15 = vector.load %arg4[%c5, %c0_10] : memref<8x128xf32, #tpu.memory_space<vmem>>, vector<1x128xf32>
    %16 = vector.extract_strided_slice %6 {offsets = [0, 128], sizes = [32, 128], strides = [1, 1]} : vector<32x256xf32> to vector<32x128xf32>
    %17 = vector.broadcast %14 : vector<1x128xf32> to vector<32x128xf32>
    %18 = arith.mulf %16, %17 : vector<32x128xf32>
    %19 = vector.broadcast %15 : vector<1x128xf32> to vector<32x128xf32>
    %20 = arith.addf %18, %19 : vector<32x128xf32>
    %21 = vector.shape_cast %13 : vector<32x128xf32> to vector<2x16x128xf32>
    %cst_11 = arith.constant 0.000000e+00 : f32
    %22 = vector.broadcast %cst_11 : f32 to vector<2x1x128xf32>
    %23 = tpu.concatenate %22, %21, %22 in 1 : vector<2x1x128xf32>, vector<2x16x128xf32>, vector<2x1x128xf32> -> vector<2x18x128xf32>
    %24 = vector.extract_strided_slice %23 {offsets = [0, 0, 0], sizes = [2, 16, 128], strides = [1, 1, 1]} : vector<2x18x128xf32> to vector<2x16x128xf32>
    %25 = vector.extract_strided_slice %23 {offsets = [0, 1, 0], sizes = [2, 16, 128], strides = [1, 1, 1]} : vector<2x18x128xf32> to vector<2x16x128xf32>
    %26 = vector.extract_strided_slice %23 {offsets = [0, 2, 0], sizes = [2, 16, 128], strides = [1, 1, 1]} : vector<2x18x128xf32> to vector<2x16x128xf32>
    %27 = tpu.concatenate %24, %25, %26 in 2 : vector<2x16x128xf32>, vector<2x16x128xf32>, vector<2x16x128xf32> -> vector<2x16x384xf32>
    %28 = vector.shape_cast %27 : vector<2x16x384xf32> to vector<32x384xf32>
    %29 = arith.truncf %28 : vector<32x384xf32> to vector<32x384xbf16>
    %c0_12 = arith.constant 0 : index
    %c0_13 = arith.constant 0 : index
    %30 = vector.load %arg3[%c0_12, %c0_13] : memref<384x128xbf16, #tpu.memory_space<vmem>>, vector<384x128xbf16>
    %cst_14 = arith.constant dense<0.000000e+00> : vector<32x128xf32>
    %31 = tpu.matmul %29, %30, %cst_14 {dimension_numbers = #tpu.dot_dimension_numbers<[1], [0], [0], [1], [0, 0, 1, 1], [], []>} : vector<32x384xbf16>, vector<384x128xbf16>, vector<32x128xf32> -> vector<32x128xf32>
    %32 = vector.broadcast %2 : vector<1x128xf32> to vector<32x128xf32>
    %33 = arith.mulf %31, %32 : vector<32x128xf32>
    %34 = vector.broadcast %3 : vector<1x128xf32> to vector<32x128xf32>
    %35 = arith.addf %33, %34 : vector<32x128xf32>
    %36 = arith.addf %35, %20 : vector<32x128xf32>
    %cst_15 = arith.constant 0.000000e+00 : f32
    %37 = vector.broadcast %cst_15 : f32 to vector<32x128xf32>
    %38 = arith.maximumf %36, %37 : vector<32x128xf32>
    %c0_16 = arith.constant 0 : index
    %c0_17 = arith.constant 0 : index
    %39 = vector.load %arg5[%c0_16, %c0_17] : memref<32x128xf32, #tpu.memory_space<vmem>>, vector<32x128xf32>
    tpu.vector_store %arg5[%c0_16, %c0_17], %38 {strides = array<i32>} : memref<32x128xf32, #tpu.memory_space<vmem>>, vector<32x128xf32>,
    return
  }
  func.func @transform_0(%arg0: i32) -> (i32, i32) {
    %c0_i32 = arith.constant 0 : i32
    %c0_i32_0 = arith.constant 0 : i32
    return %arg0, %c0_i32 : i32, i32
  }
  func.func @transform_1(%arg0: i32) -> (i32, i32) {
    %c0_i32 = arith.constant 0 : i32
    %c0_i32_0 = arith.constant 0 : i32
    %c0_i32_1 = arith.constant 0 : i32
    return %c0_i32, %c0_i32_0 : i32, i32
  }
  func.func @transform_2(%arg0: i32) -> (i32, i32) {
    %c0_i32 = arith.constant 0 : i32
    %c0_i32_0 = arith.constant 0 : i32
    %c0_i32_1 = arith.constant 0 : i32
    return %c0_i32, %c0_i32_0 : i32, i32
  }
  func.func @transform_3(%arg0: i32) -> (i32, i32) {
    %c0_i32 = arith.constant 0 : i32
    %c0_i32_0 = arith.constant 0 : i32
    %c0_i32_1 = arith.constant 0 : i32
    return %c0_i32, %c0_i32_0 : i32, i32
  }
  func.func @transform_4(%arg0: i32) -> (i32, i32) {
    %c0_i32 = arith.constant 0 : i32
    %c0_i32_0 = arith.constant 0 : i32
    return %arg0, %c0_i32 : i32, i32
  }
}

</mosaic_0001>

<llo_original>
// kernel: tpu_custom_call.1
$region0: #{tpu_custom_call.1}
  #allocation0 [shape = 'u32[]', space=smem, size = 0x4, offset = 0x4, fixed_abs, tag = 'smem constant byte address 0x4 - core index']
  #allocation1 [shape = 'u32[144,128]{1,0:T(1,128)}', space=vmem, size = 0x12000, scoped, tag = 'internal scratch']
  %s0 = inlined_call_operand.hbm [shape: bf16[32,216], index: 0, kind: input, shape index: {}]
  %s1 = inlined_call_operand.hbm [shape: bf16[216,256], index: 1, kind: input, shape index: {}]
  %s2 = inlined_call_operand.hbm [shape: bf16[384,128], index: 2, kind: input, shape index: {}]
  %s3 = inlined_call_operand.hbm [shape: f32[8,128], index: 3, kind: input, shape index: {}]
  %s4 = inlined_call_operand.hbm [shape: f32[32,128], index: 4, kind: output, shape index: {}]
  %s5 = sld [smem:[#allocation0]]
  $region42: #{tpu_custom_call.1} parent=0
    _
  %s7 = ssub.s32 1, %s5
  %s8 = scalar_select 0, %s7, %s5
  $region1: #{tpu_custom_call.1} parent=0
    #allocation2 [shape = 'u8[16384]{0}', space=vmem, size = 0x4000, scoped, tag = 'input window, operand 0, single buffered']
    #allocation3 [shape = 's32[1]{0}', space=sflag, size = 0x4, scoped, tag = 'scoped memory for tpu_custom_call.1']
    #allocation4 [shape = 's32[1]{0}', space=sflag, size = 0x4, scoped, tag = 'scoped memory for tpu_custom_call.1']
    #allocation5 [shape = 'u8[110592]{0}', space=vmem, size = 0x1b000, scoped, tag = 'input window, operand 1, single buffered']
    #allocation6 [shape = 's32[1]{0}', space=sflag, size = 0x4, scoped, tag = 'scoped memory for tpu_custom_call.1']
    #allocation7 [shape = 'u8[98304]{0}', space=vmem, size = 0x18000, scoped, tag = 'input window, operand 2, single buffered']
    #allocation8 [shape = 'u8[4096]{0}', space=vmem, size = 0x1000, scoped, tag = 'input window, operand 3, single buffered']
    #allocation9 [shape = 's32[1]{0}', space=sflag, size = 0x4, scoped, tag = 'scoped memory for tpu_custom_call.1']
    #allocation10 [shape = 'u8[16384]{0}', space=vmem, size = 0x4000, scoped, tag = 'output window, operand 0, single buffered']
    %9 = vsyncpa [#allocation3], 0
    %10 = vsyncpa [#allocation6], 0
    %11 = vsyncpa [#allocation9], 0
    %12 = vsyncpa [#allocation4], 0
    // Predicated region
    $region2: #{tpu_custom_call.1} parent=1 // pred_check
      _
    $region3: #{tpu_custom_call.1} parent=1 // pred_check_branch
      %14 = sbr.rel (0) target = $region5
    $region4: #{tpu_custom_call.1} parent=1 // pred_region
      %s16 = ssub.s32 512, 512
      %17 = vsyncadd [#allocation3], %s16
      %s18 = sshll.u32 [#allocation2], 4
      %s19 = int_to_ptr.vmem [resolvable:$true] %s18
      %24 = dma.hbm_to_vmem [thread:$0]  %s0, 512, %s19, [#allocation3], 128, 128, 8
    $region5: #{tpu_custom_call.1} parent=1 // pred_fallthru
      _
    // Predicated region
    $region6: #{tpu_custom_call.1} parent=1 // pred_check
      _
    $region7: #{tpu_custom_call.1} parent=1 // pred_check_branch
      %26 = sbr.rel (0) target = $region9
    $region8: #{tpu_custom_call.1} parent=1 // pred_region
      %s28 = ssub.s32 3456, 3456
      %29 = vsyncadd [#allocation6], %s28
      %s30 = sshll.u32 [#allocation5], 4
      %s31 = int_to_ptr.vmem [resolvable:$true] %s30
      %36 = dma.hbm_to_vmem [thread:$0]  %s1, 3456, %s31, [#allocation6], 128, 128, 8
    $region9: #{tpu_custom_call.1} parent=1 // pred_fallthru
      _
    // Predicated region
    $region10: #{tpu_custom_call.1} parent=1 // pred_check
      _
    $region11: #{tpu_custom_call.1} parent=1 // pred_check_branch
      %38 = sbr.rel (0) target = $region13
    $region12: #{tpu_custom_call.1} parent=1 // pred_region
      %s40 = ssub.s32 3072, 3072
      %41 = vsyncadd [#allocation6], %s40
      %s42 = sshll.u32 [#allocation7], 4
      %s43 = int_to_ptr.vmem [resolvable:$true] %s42
      %48 = dma.hbm_to_vmem [thread:$0]  %s2, 3072, %s43, [#allocation6], 64, 64, 4
    $region13: #{tpu_custom_call.1} parent=1 // pred_fallthru
      _
    // Predicated region
    $region14: #{tpu_custom_call.1} parent=1 // pred_check
      _
    $region15: #{tpu_custom_call.1} parent=1 // pred_check_branch
      %50 = sbr.rel (0) target = $region17
    $region16: #{tpu_custom_call.1} parent=1 // pred_region
      %s52 = ssub.s32 128, 128
      %53 = vsyncadd [#allocation9], %s52
      %s55 = sshll.u32 [#allocation8], 4
      %s56 = int_to_ptr.vmem [resolvable:$true] %s55
      %58 = dma.hbm_to_vmem [thread:$0]  %s3, 128, %s56, [#allocation9]
    $region17: #{tpu_custom_call.1} parent=1 // pred_fallthru
      _
    // Predicated region
    $region18: #{tpu_custom_call.1} parent=1 // pred_check
      _
    $region19: #{tpu_custom_call.1} parent=1 // pred_check_branch
      %60 = sbr.rel (0) target = $region21
    $region20: #{tpu_custom_call.1} parent=1 // pred_region
      %61 = dma.done [#allocation3], 512
    $region21: #{tpu_custom_call.1} parent=1 // pred_fallthru
      _
    // Predicated region
    $region22: #{tpu_custom_call.1} parent=1 // pred_check
      _
    $region23: #{tpu_custom_call.1} parent=1 // pred_check_branch
      %63 = sbr.rel (0) target = $region25
    $region24: #{tpu_custom_call.1} parent=1 // pred_region
      %64 = dma.done [#allocation6], 3456
    $region25: #{tpu_custom_call.1} parent=1 // pred_fallthru
      _
    // Predicated region
    $region26: #{tpu_custom_call.1} parent=1 // pred_check
      _
    $region27: #{tpu_custom_call.1} parent=1 // pred_check_branch
      %66 = sbr.rel (0) target = $region29
    $region28: #{tpu_custom_call.1} parent=1 // pred_region
      %67 = dma.done [#allocation6], 3072
    $region29: #{tpu_custom_call.1} parent=1 // pred_fallthru
      _
    // Predicated region
    $region30: #{tpu_custom_call.1} parent=1 // pred_check
      _
    $region31: #{tpu_custom_call.1} parent=1 // pred_check_branch
      %69 = sbr.rel (0) target = $region33
    $region32: #{tpu_custom_call.1} parent=1 // pred_region
      %70 = dma.done [#allocation9], 128
    $region33: #{tpu_custom_call.1} parent=1 // pred_fallthru
      _
    %v72 = vld [vmem:[#allocation8] sm:$0x1]
    %v73 = vld [vmem:[#allocation8 + $0x1] sm:$0x1]
    %v74 = vld [vmem:[#allocation8 + $0x2] sm:$0x1]
    %v75 = vld [vmem:[#allocation8 + $0x3] sm:$0x1]
    %v76 = vld [vmem:[#allocation2] sm:$0xff]
    %v77 = vld [vmem:[#allocation2 + $0x8] sm:$0xff]
    %v78 = vld [vmem:[#allocation2 + $0x10] sm:$0xff]
    %v79 = vld [vmem:[#allocation2 + $0x18] sm:$0xff]
    %v80 = vld [vmem:[#allocation5] sm:$0xff]
    %v81 = vld [vmem:[#allocation5 + $0x8] sm:$0xff]
    %v82 = vld [vmem:[#allocation5 + $0x10] sm:$0xff]
    %v83 = vld [vmem:[#allocation5 + $0x18] sm:$0xff]
    %v84 = vld [vmem:[#allocation5 + $0x20] sm:$0xff]
    %v85 = vld [vmem:[#allocation5 + $0x28] sm:$0xff]
    %v86 = vld [vmem:[#allocation5 + $0x30] sm:$0xff]
    %v87 = vld [vmem:[#allocation5 + $0x38] sm:$0xff]
    %v88 = vld [vmem:[#allocation5 + $0x40] sm:$0xff]
    %v89 = vld [vmem:[#allocation5 + $0x48] sm:$0xff]
    %v90 = vld [vmem:[#allocation5 + $0x50] sm:$0xff]
    %v91 = vld [vmem:[#allocation5 + $0x58] sm:$0xff]
    %v92 = vld [vmem:[#allocation5 + $0x60] sm:$0xff]
    %v93 = vld [vmem:[#allocation5 + $0x68] sm:$0xff]
    %v94 = vld [vmem:[#allocation5 + $0x70] sm:$0xff]
    %v95 = vld [vmem:[#allocation5 + $0x78] sm:$0xff]
    %v96 = vld [vmem:[#allocation5 + $0x80] sm:$0xff]
    %v97 = vld [vmem:[#allocation5 + $0x88] sm:$0xff]
    %v98 = vld [vmem:[#allocation5 + $0x90] sm:$0xff]
    %v99 = vld [vmem:[#allocation5 + $0x98] sm:$0xff]
    %v100 = vld [vmem:[#allocation5 + $0xa0] sm:$0xff]
    %v101 = vld [vmem:[#allocation5 + $0xa8] sm:$0xff]
    %v102 = vld [vmem:[#allocation5 + $0xb0] sm:$0xff]
    %v103 = vld [vmem:[#allocation5 + $0xb8] sm:$0xff]
    %v104 = vld [vmem:[#allocation5 + $0xc0] sm:$0xff]
    %v105 = vld [vmem:[#allocation5 + $0xc8] sm:$0xff]
    %v106 = vld [vmem:[#allocation5 + $0xd0] sm:$0xff]
    %v111 = vunpack.c.l.b16 %v76
    %v112 = vunpack.c.h.b16 %v76
    %v113 = vunpack.c.l.b16 %v77
    %v114 = vunpack.c.h.b16 %v77
    %v115 = vunpack.c.l.b16 %v78
    %v116 = vunpack.c.h.b16 %v78
    %v117 = vunpack.c.l.b16 %v79
    %v118 = vunpack.c.h.b16 %v79
    %v119 = vpack.c.b16 %v113, %v111
    %v120 = vpack.c.b16 %v114, %v112
    %v121 = vpack.c.b16 %v117, %v115
    %v122 = vpack.c.b16 %v118, %v116
    %v152 = vunpack.c.l.b16 %v80
    %v153 = vunpack.c.h.b16 %v80
    %v154 = vunpack.c.l.b16 %v81
    %v155 = vunpack.c.h.b16 %v81
    %v156 = vunpack.c.l.b16 %v82
    %v157 = vunpack.c.h.b16 %v82
    %v158 = vunpack.c.l.b16 %v83
    %v159 = vunpack.c.h.b16 %v83
    %v160 = vunpack.c.l.b16 %v84
    %v161 = vunpack.c.h.b16 %v84
    %v162 = vunpack.c.l.b16 %v85
    %v163 = vunpack.c.h.b16 %v85
    %v164 = vunpack.c.l.b16 %v86
    %v165 = vunpack.c.h.b16 %v86
    %v166 = vunpack.c.l.b16 %v87
    %v167 = vunpack.c.h.b16 %v87
    %v168 = vunpack.c.l.b16 %v88
    %v169 = vunpack.c.h.b16 %v88
    %v170 = vunpack.c.l.b16 %v89
    %v171 = vunpack.c.h.b16 %v89
    %v172 = vunpack.c.l.b16 %v90
    %v173 = vunpack.c.h.b16 %v90
    %v174 = vunpack.c.l.b16 %v91
    %v175 = vunpack.c.h.b16 %v91
    %v176 = vunpack.c.l.b16 %v92
    %v177 = vunpack.c.h.b16 %v92
    %v178 = vunpack.c.l.b16 %v93
    %v179 = vunpack.c.h.b16 %v93
    %v180 = vunpack.c.l.b16 %v94
    %v181 = vunpack.c.h.b16 %v94
    %v182 = vunpack.c.l.b16 %v95
    %v183 = vunpack.c.h.b16 %v95
    %v184 = vunpack.c.l.b16 %v96
    %v185 = vunpack.c.h.b16 %v96
    %v186 = vunpack.c.l.b16 %v97
    %v187 = vunpack.c.h.b16 %v97
    %v188 = vunpack.c.l.b16 %v98
    %v189 = vunpack.c.h.b16 %v98
    %v190 = vunpack.c.l.b16 %v99
    %v191 = vunpack.c.h.b16 %v99
    %v192 = vunpack.c.l.b16 %v100
    %v193 = vunpack.c.h.b16 %v100
    %v194 = vunpack.c.l.b16 %v101
    %v195 = vunpack.c.h.b16 %v101
    %v196 = vunpack.c.l.b16 %v102
    %v197 = vunpack.c.h.b16 %v102
    %v198 = vunpack.c.l.b16 %v103
    %v199 = vunpack.c.h.b16 %v103
    %v200 = vunpack.c.l.b16 %v104
    %v201 = vunpack.c.h.b16 %v104
    %v202 = vunpack.c.l.b16 %v105
    %v203 = vunpack.c.h.b16 %v105
    %v204 = vunpack.c.l.b16 %v106
    %v205 = vunpack.c.h.b16 %v106
    %v206 = vpack.c.b16 %v154, %v152
    %v207 = vpack.c.b16 %v155, %v153
    %v208 = vpack.c.b16 %v158, %v156
    %v209 = vpack.c.b16 %v159, %v157
    %v210 = vpack.c.b16 %v162, %v160
    %v211 = vpack.c.b16 %v163, %v161
    %v212 = vpack.c.b16 %v166, %v164
    %v213 = vpack.c.b16 %v167, %v165
    %v214 = vpack.c.b16 %v170, %v168
    %v215 = vpack.c.b16 %v171, %v169
    %v216 = vpack.c.b16 %v174, %v172
    %v217 = vpack.c.b16 %v175, %v173
    %v218 = vpack.c.b16 %v178, %v176
    %v219 = vpack.c.b16 %v179, %v177
    %v220 = vpack.c.b16 %v182, %v180
    %v221 = vpack.c.b16 %v183, %v181
    %v222 = vpack.c.b16 %v186, %v184
    %v223 = vpack.c.b16 %v187, %v185
    %v224 = vpack.c.b16 %v190, %v188
    %v225 = vpack.c.b16 %v191, %v189
    %v226 = vpack.c.b16 %v194, %v192
    %v227 = vpack.c.b16 %v195, %v193
    %v228 = vpack.c.b16 %v198, %v196
    %v229 = vpack.c.b16 %v199, %v197
    %v230 = vpack.c.b16 %v202, %v200
    %v231 = vpack.c.b16 %v203, %v201
    %v232 = vpack.c.b16 %v204, %v204
    %v233 = vpack.c.b16 %v205, %v205
    %vm260 = vcmask 719872
    %v262 = vsel %vm260, %v120, 0
    %v265 = vsel %vm260, %v122, 0
    %vm267 = vcmask 1043456
    %v269 = vsel %vm267, %v232, 0
    %v272 = vsel %vm267, %v233, 0
    %274 = vmatprep.subr.bf16.mxu0 %v221
    %275 = vmatpush1.bf16.msra.mxu0 %v220
    %276 = vmatprep.subr.bf16.mxu0 %v219
    %277 = vmatpush1.bf16.msra.mxu0 %v218
    %278 = vmatprep.subr.bf16.mxu0 %v217
    %279 = vmatpush1.bf16.msra.mxu0 %v216
    %280 = vmatprep.subr.bf16.mxu0 %v215
    %281 = vmatpush1.bf16.msra.mxu0 %v214
    %282 = vmatprep.subr.bf16.mxu0 %v213
    %283 = vmatpush1.bf16.msra.mxu0 %v212
    %284 = vmatprep.subr.bf16.mxu0 %v211
    %285 = vmatpush1.bf16.msra.mxu0 %v210
    %286 = vmatprep.subr.bf16.mxu0 %v209
    %287 = vmatpush1.bf16.msra.mxu0 %v208
    %288 = vmatprep.subr.bf16.mxu0 %v207
    %289 = vmatpush1.bf16.msra.mxu0 %v206
    %290 = vmatprep.subr.bf16.mxu0 0
    %291 = vmatpush2.bf16.msra.mxu0 0
    %292 = vmatprep.subr.bf16.mxu0 0
    %293 = vmatpush2.bf16.msra.mxu0 0
    %294 = vmatprep.subr.bf16.mxu0 %v272
    %295 = vmatpush2.bf16.msra.mxu0 %v269
    %296 = vmatprep.subr.bf16.mxu0 %v231
    %297 = vmatpush2.bf16.msra.mxu0 %v230
    %298 = vmatprep.subr.bf16.mxu0 %v229
    %299 = vmatpush2.bf16.msra.mxu0 %v228
    %300 = vmatprep.subr.bf16.mxu0 %v227
    %301 = vmatpush2.bf16.msra.mxu0 %v226
    %302 = vmatprep.subr.bf16.mxu0 %v225
    %303 = vmatpush2.bf16.msra.mxu0 %v224
    %304 = vmatprep.subr.bf16.mxu0 %v223
    %305 = vmatpush2.bf16.msra.mxu0 %v222
    %306 = vmatprep.mubr.bf16.mxu0 %v262
    %307 = vmatmul.mubr.bf16.gmra.mxu0 %v119
    %v308 = vpop.f32.mrf.mxu0
    %v309 = vadd.f32 0.0, %v308
    %v310 = vpop.f32.mrf.mxu0
    %v311 = vadd.f32 0.0, %v310
    %v312 = vpop.f32.mrf.mxu0
    %v313 = vadd.f32 0.0, %v312
    %v314 = vpop.f32.mrf.mxu0
    %v315 = vadd.f32 0.0, %v314
    %316 = vmatprep.mubr.bf16.mxu0 %v265
    %317 = vmatmul.mubr.bf16.gmra.mxu0 %v121
    %v318 = vpop.f32.mrf.mxu0
    %v319 = vadd.f32 0.0, %v318
    %v320 = vpop.f32.mrf.mxu0
    %v321 = vadd.f32 0.0, %v320
    %v322 = vpop.f32.mrf.mxu0
    %v323 = vadd.f32 0.0, %v322
    %v324 = vpop.f32.mrf.mxu0
    %v325 = vadd.f32 0.0, %v324
    %326 = vdwg.mxu0
    %v327 = vlaneseq
    %v328 = vshrl.u32 %v327, 7
    %v329 = vsub.s32 0, %v328
    %v330 = vrot.slane %v72, %v329
    %v331 = vmul.f32 %v309, %v330
    %v332 = vmul.f32 %v313, %v330
    %v333 = vmul.f32 %v319, %v330
    %v334 = vmul.f32 %v323, %v330
    %v335 = vlaneseq
    %v336 = vshrl.u32 %v335, 7
    %v337 = vsub.s32 0, %v336
    %v338 = vrot.slane %v73, %v337
    %v339 = vadd.f32 %v331, %v338
    %v340 = vadd.f32 %v332, %v338
    %v341 = vadd.f32 %v333, %v338
    %v342 = vadd.f32 %v334, %v338
    %v343 = vmax.f32 %v339, 0.0
    %v344 = vmax.f32 %v340, 0.0
    %v345 = vmax.f32 %v341, 0.0
    %v346 = vmax.f32 %v342, 0.0
    %v347 = vld [vmem:[#allocation8 + $0x4] sm:$0x1]
    %v348 = vld [vmem:[#allocation8 + $0x5] sm:$0x1]
    %v349 = vlaneseq
    %v350 = vshrl.u32 %v349, 7
    %v351 = vsub.s32 0, %v350
    %v352 = vrot.slane %v347, %v351
    %v353 = vmul.f32 %v311, %v352
    %v354 = vmul.f32 %v315, %v352
    %v355 = vmul.f32 %v321, %v352
    %v356 = vmul.f32 %v325, %v352
    %v357 = vlaneseq
    %v358 = vshrl.u32 %v357, 7
    %v359 = vsub.s32 0, %v358
    %v360 = vrot.slane %v348, %v359
    %v361 = vadd.f32 %v353, %v360
    %v362 = vadd.f32 %v354, %v360
    %v363 = vadd.f32 %v355, %v360
    %v364 = vadd.f32 %v356, %v360
    %vm369 = vcmask 1040384
    %v370 = vrot.slane %v343, 7
    %v371 = vrot.slane %v344, 7
    %v372 = vsel %vm369, %v370, %v371
    %v373 = vrot.slane %v345, 7
    %v374 = vrot.slane %v346, 7
    %v375 = vsel %vm369, %v373, %v374
    %v382 = vsel %vm369, 0.0, %v370
    %v383 = vsel %vm369, 0.0, %v373
    %v384 = vsel %vm369, %v371, 0.0
    %v385 = vsel %vm369, %v374, 0.0
    %vm390 = vcmask 1046528
    %v391 = vrot.slane %v382, 1
    %v392 = vrot.slane %v372, 1
    %v393 = vsel %vm390, %v391, %v392
    %v394 = vrot.slane %v384, 1
    %v395 = vsel %vm390, %v392, %v394
    %v396 = vrot.slane %v383, 1
    %v397 = vrot.slane %v375, 1
    %v398 = vsel %vm390, %v396, %v397
    %v399 = vrot.slane %v385, 1
    %v400 = vsel %vm390, %v397, %v399
    %vm405 = vcmask 1045504
    %v406 = vrot.slane %v382, 2
    %v407 = vrot.slane %v372, 2
    %v408 = vsel %vm405, %v406, %v407
    %v409 = vrot.slane %v384, 2
    %v410 = vsel %vm405, %v407, %v409
    %v411 = vrot.slane %v383, 2
    %v412 = vrot.slane %v375, 2
    %v413 = vsel %vm405, %v411, %v412
    %v414 = vrot.slane %v385, 2
    %v415 = vsel %vm405, %v412, %v414
    %v420 = vpack.c.bf16 %v372, %v382
    %v421 = vpack.c.bf16 %v395, %v393
    %v422 = vpack.c.bf16 %v410, %v408
    %v423 = vpack.c.bf16 %v375, %v383
    %v424 = vpack.c.bf16 %v400, %v398
    %v425 = vpack.c.bf16 %v415, %v413
    %v426 = vld [vmem:[#allocation7] sm:$0xf]
    %v427 = vld [vmem:[#allocation7 + $0x4] sm:$0xf]
    %v428 = vld [vmem:[#allocation7 + $0x8] sm:$0xf]
    %v429 = vld [vmem:[#allocation7 + $0xc] sm:$0xf]
    %v430 = vld [vmem:[#allocation7 + $0x10] sm:$0xf]
    %v431 = vld [vmem:[#allocation7 + $0x14] sm:$0xf]
    %v432 = vld [vmem:[#allocation7 + $0x18] sm:$0xf]
    %v433 = vld [vmem:[#allocation7 + $0x1c] sm:$0xf]
    %v434 = vld [vmem:[#allocation7 + $0x20] sm:$0xf]
    %v435 = vld [vmem:[#allocation7 + $0x24] sm:$0xf]
    %v436 = vld [vmem:[#allocation7 + $0x28] sm:$0xf]
    %v437 = vld [vmem:[#allocation7 + $0x2c] sm:$0xf]
    %v438 = vld [vmem:[#allocation7 + $0x30] sm:$0xf]
    %v439 = vld [vmem:[#allocation7 + $0x34] sm:$0xf]
    %v440 = vld [vmem:[#allocation7 + $0x38] sm:$0xf]
    %v441 = vld [vmem:[#allocation7 + $0x3c] sm:$0xf]
    %v442 = vld [vmem:[#allocation7 + $0x40] sm:$0xf]
    %v443 = vld [vmem:[#allocation7 + $0x44] sm:$0xf]
    %v444 = vld [vmem:[#allocation7 + $0x48] sm:$0xf]
    %v445 = vld [vmem:[#allocation7 + $0x4c] sm:$0xf]
    %v446 = vld [vmem:[#allocation7 + $0x50] sm:$0xf]
    %v447 = vld [vmem:[#allocation7 + $0x54] sm:$0xf]
    %v448 = vld [vmem:[#allocation7 + $0x58] sm:$0xf]
    %v449 = vld [vmem:[#allocation7 + $0x5c] sm:$0xf]
    %v450 = vld [vmem:[#allocation7 + $0x60] sm:$0xf]
    %v451 = vld [vmem:[#allocation7 + $0x64] sm:$0xf]
    %v452 = vld [vmem:[#allocation7 + $0x68] sm:$0xf]
    %v453 = vld [vmem:[#allocation7 + $0x6c] sm:$0xf]
    %v454 = vld [vmem:[#allocation7 + $0x70] sm:$0xf]
    %v455 = vld [vmem:[#allocation7 + $0x74] sm:$0xf]
    %v456 = vld [vmem:[#allocation7 + $0x78] sm:$0xf]
    %v457 = vld [vmem:[#allocation7 + $0x7c] sm:$0xf]
    %v458 = vld [vmem:[#allocation7 + $0x80] sm:$0xf]
    %v459 = vld [vmem:[#allocation7 + $0x84] sm:$0xf]
    %v460 = vld [vmem:[#allocation7 + $0x88] sm:$0xf]
    %v461 = vld [vmem:[#allocation7 + $0x8c] sm:$0xf]
    %v462 = vld [vmem:[#allocation7 + $0x90] sm:$0xf]
    %v463 = vld [vmem:[#allocation7 + $0x94] sm:$0xf]
    %v464 = vld [vmem:[#allocation7 + $0x98] sm:$0xf]
    %v465 = vld [vmem:[#allocation7 + $0x9c] sm:$0xf]
    %v466 = vld [vmem:[#allocation7 + $0xa0] sm:$0xf]
    %v467 = vld [vmem:[#allocation7 + $0xa4] sm:$0xf]
    %v468 = vld [vmem:[#allocation7 + $0xa8] sm:$0xf]
    %v469 = vld [vmem:[#allocation7 + $0xac] sm:$0xf]
    %v470 = vld [vmem:[#allocation7 + $0xb0] sm:$0xf]
    %v471 = vld [vmem:[#allocation7 + $0xb4] sm:$0xf]
    %v472 = vld [vmem:[#allocation7 + $0xb8] sm:$0xf]
    %v473 = vld [vmem:[#allocation7 + $0xbc] sm:$0xf]
    %v522 = vunpack.c.l.b16 %v426
    %v523 = vunpack.c.l.b16 %v427
    %v524 = vunpack.c.l.b16 %v428
    %v525 = vunpack.c.l.b16 %v429
    %v526 = vunpack.c.l.b16 %v430
    %v527 = vunpack.c.l.b16 %v431
    %v528 = vunpack.c.l.b16 %v432
    %v529 = vunpack.c.l.b16 %v433
    %v530 = vunpack.c.l.b16 %v434
    %v531 = vunpack.c.l.b16 %v435
    %v532 = vunpack.c.l.b16 %v436
    %v533 = vunpack.c.l.b16 %v437
    %v534 = vunpack.c.l.b16 %v438
    %v535 = vunpack.c.l.b16 %v439
    %v536 = vunpack.c.l.b16 %v440
    %v537 = vunpack.c.l.b16 %v441
    %v538 = vunpack.c.l.b16 %v442
    %v539 = vunpack.c.l.b16 %v443
    %v540 = vunpack.c.l.b16 %v444
    %v541 = vunpack.c.l.b16 %v445
    %v542 = vunpack.c.l.b16 %v446
    %v543 = vunpack.c.l.b16 %v447
    %v544 = vunpack.c.l.b16 %v448
    %v545 = vunpack.c.l.b16 %v449
    %v546 = vunpack.c.l.b16 %v450
    %v547 = vunpack.c.l.b16 %v451
    %v548 = vunpack.c.l.b16 %v452
    %v549 = vunpack.c.l.b16 %v453
    %v550 = vunpack.c.l.b16 %v454
    %v551 = vunpack.c.l.b16 %v455
    %v552 = vunpack.c.l.b16 %v456
    %v553 = vunpack.c.l.b16 %v457
    %v554 = vunpack.c.l.b16 %v458
    %v555 = vunpack.c.l.b16 %v459
    %v556 = vunpack.c.l.b16 %v460
    %v557 = vunpack.c.l.b16 %v461
    %v558 = vunpack.c.l.b16 %v462
    %v559 = vunpack.c.l.b16 %v463
    %v560 = vunpack.c.l.b16 %v464
    %v561 = vunpack.c.l.b16 %v465
    %v562 = vunpack.c.l.b16 %v466
    %v563 = vunpack.c.l.b16 %v467
    %v564 = vunpack.c.l.b16 %v468
    %v565 = vunpack.c.l.b16 %v469
    %v566 = vunpack.c.l.b16 %v470
    %v567 = vunpack.c.l.b16 %v471
    %v568 = vunpack.c.l.b16 %v472
    %v569 = vunpack.c.l.b16 %v473
    %v570 = vpack.c.b16 %v523, %v522
    %v571 = vpack.c.b16 %v525, %v524
    %v572 = vpack.c.b16 %v527, %v526
    %v573 = vpack.c.b16 %v529, %v528
    %v574 = vpack.c.b16 %v531, %v530
    %v575 = vpack.c.b16 %v533, %v532
    %v576 = vpack.c.b16 %v535, %v534
    %v577 = vpack.c.b16 %v537, %v536
    %v578 = vpack.c.b16 %v539, %v538
    %v579 = vpack.c.b16 %v541, %v540
    %v580 = vpack.c.b16 %v543, %v542
    %v581 = vpack.c.b16 %v545, %v544
    %v582 = vpack.c.b16 %v547, %v546
    %v583 = vpack.c.b16 %v549, %v548
    %v584 = vpack.c.b16 %v551, %v550
    %v585 = vpack.c.b16 %v553, %v552
    %v586 = vpack.c.b16 %v555, %v554
    %v587 = vpack.c.b16 %v557, %v556
    %v588 = vpack.c.b16 %v559, %v558
    %v589 = vpack.c.b16 %v561, %v560
    %v590 = vpack.c.b16 %v563, %v562
    %v591 = vpack.c.b16 %v565, %v564
    %v592 = vpack.c.b16 %v567, %v566
    %v593 = vpack.c.b16 %v569, %v568
    %618 = vmatprep.subr.bf16.mxu0 0
    %619 = vmatpush1.bf16.msra.mxu0 %v577
    %620 = vmatprep.subr.bf16.mxu0 0
    %621 = vmatpush1.bf16.msra.mxu0 %v576
    %622 = vmatprep.subr.bf16.mxu0 0
    %623 = vmatpush1.bf16.msra.mxu0 %v575
    %624 = vmatprep.subr.bf16.mxu0 0
    %625 = vmatpush1.bf16.msra.mxu0 %v574
    %626 = vmatprep.subr.bf16.mxu0 0
    %627 = vmatpush1.bf16.msra.mxu0 %v573
    %628 = vmatprep.subr.bf16.mxu0 0
    %629 = vmatpush1.bf16.msra.mxu0 %v572
    %630 = vmatprep.subr.bf16.mxu0 0
    %631 = vmatpush1.bf16.msra.mxu0 %v571
    %632 = vmatprep.subr.bf16.mxu0 0
    %633 = vmatpush1.bf16.msra.mxu0 %v570
    %634 = vmatprep.subr.bf16.mxu0 0
    %635 = vmatpush2.bf16.msra.mxu0 %v585
    %636 = vmatprep.subr.bf16.mxu0 0
    %637 = vmatpush2.bf16.msra.mxu0 %v584
    %638 = vmatprep.subr.bf16.mxu0 0
    %639 = vmatpush2.bf16.msra.mxu0 %v583
    %640 = vmatprep.subr.bf16.mxu0 0
    %641 = vmatpush2.bf16.msra.mxu0 %v582
    %642 = vmatprep.subr.bf16.mxu0 0
    %643 = vmatpush2.bf16.msra.mxu0 %v581
    %644 = vmatprep.subr.bf16.mxu0 0
    %645 = vmatpush2.bf16.msra.mxu0 %v580
    %646 = vmatprep.subr.bf16.mxu0 0
    %647 = vmatpush2.bf16.msra.mxu0 %v579
    %648 = vmatprep.subr.bf16.mxu0 0
    %649 = vmatpush2.bf16.msra.mxu0 %v578
    %650 = vmatprep.mubr.bf16.mxu0 %v421
    %651 = vmatmul.mubr.bf16.gmra.mxu0 %v420
    %v652 = vpop.f32.mrf.mxu0
    %v653 = vadd.f32 0.0, %v652
    %v654 = vpop.f32.mrf.mxu0
    %v655 = vpop.f32.mrf.mxu0
    %v656 = vadd.f32 0.0, %v655
    %v657 = vpop.f32.mrf.mxu0
    %658 = vmatprep.mubr.bf16.mxu0 %v424
    %659 = vmatmul.mubr.bf16.gmra.mxu0 %v423
    %v660 = vpop.f32.mrf.mxu0
    %v661 = vadd.f32 0.0, %v660
    %v662 = vpop.f32.mrf.mxu0
    %v663 = vpop.f32.mrf.mxu0
    %v664 = vadd.f32 0.0, %v663
    %v665 = vpop.f32.mrf.mxu0
    %666 = vdwg.mxu0
    %667 = vmatprep.subr.bf16.mxu0 0
    %668 = vmatpush1.bf16.msra.mxu0 %v593
    %669 = vmatprep.subr.bf16.mxu0 0
    %670 = vmatpush1.bf16.msra.mxu0 %v592
    %671 = vmatprep.subr.bf16.mxu0 0
    %672 = vmatpush1.bf16.msra.mxu0 %v591
    %673 = vmatprep.subr.bf16.mxu0 0
    %674 = vmatpush1.bf16.msra.mxu0 %v590
    %675 = vmatprep.subr.bf16.mxu0 0
    %676 = vmatpush1.bf16.msra.mxu0 %v589
    %677 = vmatprep.subr.bf16.mxu0 0
    %678 = vmatpush1.bf16.msra.mxu0 %v588
    %679 = vmatprep.subr.bf16.mxu0 0
    %680 = vmatpush1.bf16.msra.mxu0 %v587
    %681 = vmatprep.subr.bf16.mxu0 0
    %682 = vmatpush1.bf16.msra.mxu0 %v586
    %683 = vmatprep.subr.bf16.mxu0 0
    %684 = vmatpush2.bf16.msra.mxu0 0
    %685 = vmatprep.subr.bf16.mxu0 0
    %686 = vmatpush2.bf16.msra.mxu0 0
    %687 = vmatprep.subr.bf16.mxu0 0
    %688 = vmatpush2.bf16.msra.mxu0 0
    %689 = vmatprep.subr.bf16.mxu0 0
    %690 = vmatpush2.bf16.msra.mxu0 0
    %691 = vmatprep.subr.bf16.mxu0 0
    %692 = vmatpush2.bf16.msra.mxu0 0
    %693 = vmatprep.subr.bf16.mxu0 0
    %694 = vmatpush2.bf16.msra.mxu0 0
    %695 = vmatprep.subr.bf16.mxu0 0
    %696 = vmatpush2.bf16.msra.mxu0 0
    %697 = vmatprep.subr.bf16.mxu0 0
    %698 = vmatpush2.bf16.msra.mxu0 0
    %699 = vmatprep.mubr.bf16.mxu0 0
    %700 = vmatmul.mubr.bf16.gmra.mxu0 %v422
    %v701 = vpop.f32.mrf.mxu0
    %v702 = vadd.f32 %v653, %v701
    %v703 = vpop.f32.mrf.mxu0
    %v704 = vpop.f32.mrf.mxu0
    %v705 = vadd.f32 %v656, %v704
    %v706 = vpop.f32.mrf.mxu0
    %707 = vmatprep.mubr.bf16.mxu0 0
    %708 = vmatmul.mubr.bf16.gmra.mxu0 %v425
    %v709 = vpop.f32.mrf.mxu0
    %v710 = vadd.f32 %v661, %v709
    %v711 = vpop.f32.mrf.mxu0
    %v712 = vpop.f32.mrf.mxu0
    %v713 = vadd.f32 %v664, %v712
    %v714 = vpop.f32.mrf.mxu0
    %715 = vdwg.mxu0
    %v716 = vlaneseq
    %v717 = vshrl.u32 %v716, 7
    %v718 = vsub.s32 0, %v717
    %v719 = vrot.slane %v74, %v718
    %v720 = vmul.f32 %v702, %v719
    %v721 = vmul.f32 %v705, %v719
    %v722 = vmul.f32 %v710, %v719
    %v723 = vmul.f32 %v713, %v719
    %v724 = vlaneseq
    %v725 = vshrl.u32 %v724, 7
    %v726 = vsub.s32 0, %v725
    %v727 = vrot.slane %v75, %v726
    %v728 = vadd.f32 %v720, %v727
    %v729 = vadd.f32 %v721, %v727
    %v730 = vadd.f32 %v722, %v727
    %v731 = vadd.f32 %v723, %v727
    %v732 = vadd.f32 %v728, %v361
    %v733 = vadd.f32 %v729, %v362
    %v734 = vadd.f32 %v730, %v363
    %v735 = vadd.f32 %v731, %v364
    %v736 = vmax.f32 %v732, 0.0
    %v737 = vmax.f32 %v733, 0.0
    %v738 = vmax.f32 %v734, 0.0
    %v739 = vmax.f32 %v735, 0.0
    %740 = vst [vmem:[#allocation10] sm:$0xff] %v736
    %741 = vst [vmem:[#allocation10 + $0x8] sm:$0xff] %v737
    %742 = vst [vmem:[#allocation10 + $0x10] sm:$0xff] %v738
    %743 = vst [vmem:[#allocation10 + $0x18] sm:$0xff] %v739
    // Predicated region
    $region34: #{tpu_custom_call.1} parent=1 // pred_check
      _
    $region35: #{tpu_custom_call.1} parent=1 // pred_check_branch
      %745 = sbr.rel (0) target = $region37
    $region36: #{tpu_custom_call.1} parent=1 // pred_region
      %s747 = ssub.s32 512, 512
      %748 = vsyncadd [#allocation4], %s747
      %s749 = sshll.u32 [#allocation10], 4
      %s750 = int_to_ptr.vmem [resolvable:$true] %s749
      %755 = dma.vmem_to_hbm [thread:$0]  %s750, 512, %s4, [#allocation4], 128, 128, 8
    $region37: #{tpu_custom_call.1} parent=1 // pred_fallthru
      _
    // Predicated region
    $region38: #{tpu_custom_call.1} parent=1 // pred_check
      _
    $region39: #{tpu_custom_call.1} parent=1 // pred_check_branch
      %757 = sbr.rel (0) target = $region41
    $region40: #{tpu_custom_call.1} parent=1 // pred_region
      %758 = dma.done [#allocation4], 512
    $region41: #{tpu_custom_call.1} parent=1 // pred_fallthru
      _
    %759 = vsyncpa [#allocation3], 1
    %760 = vsyncpa [#allocation6], 1
    %761 = vsyncpa [#allocation9], 1
    %762 = vsyncpa [#allocation4], 1

</llo_original>
